<compile_context>
chip_gen: v7x
topology: tpu7x:2x2x1
jax: 0.10.0
libtpu: 0.0.40
codegen_flags: <defaults>
</compile_context>

<pallas_src>
import functools

import jax
import jax.numpy as jnp
from jax import lax
from jax.experimental import pallas as pl
from jax.experimental.pallas import tpu as pltpu


def _round_up(x, m):
    return ((x + m - 1) // m) * m


# -----------------------------------------------------------------------------
# Fused kernel: one batch tile (tb images) per grid step.
#   per image b:  a        = ReLU(W_conv^T @ x_b + bias)      (F, HWp)   MXU+VPU
#                 feats[b] = pool_mask @ a^T                  (1, F)     MXU matvec
#                 (1/HW folded into wc_t; pad pixels masked out)
#   per tile:     x1     = feats @ (W_c^T / HW)               (tb, Kp)   MXU
#                 proj   = (x1 - mean) * inv_std              (tb, Kp)   VPU
#                 logits = proj @ W_g^T + b_g                 (tb, Cp)   MXU
# All head weights stay VMEM-resident across the batch grid; features never
# round-trip through HBM.
# -----------------------------------------------------------------------------
def cbm_fused_kernel(x_ref, wt_ref, b_ref, wc_ref, mean_ref, istd_ref,
                     wg_ref, bg_ref, logits_ref, proj_ref, feats_ref, *, hw):
    # x_ref:     (tb, Cin, HWp)  batch tile, pixels on the lane axis
    # wt_ref:    (F, Cin)        1x1 conv weight, pre-transposed (mxu dtype)
    # b_ref:     (F, 1)          conv bias (f32, broadcast over pixels)
    # wc_ref:    (F, Kp)         (W_c^T / HW), zero-padded to Kp (mxu dtype)
    # mean_ref:  (1, Kp)         proj_mean (padded with 0, f32)
    # istd_ref:  (1, Kp)         1 / proj_std (padded with 1, f32)
    # wg_ref:    (Kp, Cp)        W_g^T, zero-padded (mxu dtype)
    # bg_ref:    (1, Cp)         final bias (padded with 0, f32)
    # logits_ref:(tb, Cp)        output
    # proj_ref:  (tb, Kp)        output (normalized concept activations)
    # feats_ref: (tb, F)         f32 scratch (pooled backbone features)
    tb, _, hwp = x_ref.shape
    mxu_dt = wt_ref.dtype

    # Loop-invariant operands, hoisted out of the per-image loop.
    wt = wt_ref[...]                                    # (F, Cin)
    bias = b_ref[...]                                   # (F, 1) f32

    # 0/1 pooling mask (f32, exact): real pixels contribute, zero-padded pad
    # pixels (whose ReLU(0 + bias) != 0) are excluded.  1/HW lives in wc_ref.
    if hwp == hw:
        pool_row = jnp.ones((1, hwp), jnp.float32)
    else:
        col = lax.broadcasted_iota(jnp.int32, (1, hwp), 1)
        pool_row = (col < hw).astype(jnp.float32)       # (1, hwp)

    def per_image(b, carry):
        xb = x_ref[b]                                    # (Cin, HWp), mxu dtype
        a = jnp.dot(wt, xb, preferred_element_type=jnp.float32)   # (F, HWp)
        a = jnp.maximum(a + bias, 0.0)                   # ReLU, f32
        # Pool on the MXU: contract the pixel (lane) axis of both operands
        # (A @ B^T form) -> (1, F).  f32 operands keep the pool exact.
        pooled = lax.dot_general(pool_row, a, (((1,), (1,)), ((), ())),
                                 preferred_element_type=jnp.float32)
        feats_ref[pl.ds(b, 1), :] = pooled               # write row b
        return carry

    lax.fori_loop(0, tb, per_image, 0)

    # proj_layer (bias-free Linear) with 1/HW pre-folded into the weight.
    feats = feats_ref[...].astype(mxu_dt)                # (tb, F)
    x1 = jnp.dot(feats, wc_ref[...],
                 preferred_element_type=jnp.float32)     # (tb, Kp)

    # Concept normalization with precomputed reciprocal std (VPU multiply).
    proj = (x1 - mean_ref[...]) * istd_ref[...]          # (tb, Kp)
    proj_ref[...] = proj

    # Final classifier.
    logits_ref[...] = (
        jnp.dot(proj.astype(mxu_dt), wg_ref[...],
                preferred_element_type=jnp.float32)
        + bg_ref[...])                                   # (tb, Cp)


# -----------------------------------------------------------------------------
# One-time parameter preparation (pre-transpose, pad, fold 1/HW, precompute
# 1/std, optional bf16 cast of MXU operands).
# -----------------------------------------------------------------------------
def prepare_params(params, *, hw, mxu_dtype=jnp.float32, lane=128):
    """hw = H*W of the backbone feature map (1/HW is folded into W_c^T in f32
    before any dtype cast).  Set mxu_dtype=jnp.bfloat16 for the fast MXU path
    (validate accuracy separately — it will likely exceed 1e-4)."""
    w_conv = params["w_conv"]          # (Cin, F)
    b_conv = params["b_conv"]          # (1, F)
    W_c = params["W_c"]                # (K, F)
    W_g = params["W_g"]                # (Cout, K)
    b_g = params["b_g"]                # (1, Cout)
    mean = params["proj_mean"]         # (1, K)
    std = params["proj_std"]           # (1, K)

    K, F = W_c.shape
    Cout = W_g.shape[0]
    Kp = _round_up(K, lane)
    Cp = _round_up(Cout, lane)

    # Average-pool 1/HW folded into the proj weight in f32 (exact wrt. the
    # reference), then cast once to the MXU dtype.
    wc_scaled = W_c.T.astype(jnp.float32) / float(hw)                # (F, K)
    wc_t = jnp.zeros((F, Kp), mxu_dtype).at[:, :K].set(
        wc_scaled.astype(mxu_dtype))
    wg_t = jnp.zeros((Kp, Cp), mxu_dtype).at[:K, :Cout].set(
        W_g.T.astype(mxu_dtype))
    mean_p = jnp.zeros((1, Kp), jnp.float32).at[:, :K].set(
        mean.astype(jnp.float32))
    istd_p = jnp.ones((1, Kp), jnp.float32).at[:, :K].set(
        (1.0 / std).astype(jnp.float32))
    bg_p = jnp.zeros((1, Cp), jnp.float32).at[:, :Cout].set(
        b_g.astype(jnp.float32))

    return {
        "wt_conv": w_conv.T.astype(mxu_dtype),                  # (F, Cin)
        "b_conv": b_conv.reshape(-1, 1).astype(jnp.float32),    # (F, 1)
        "wc_t": wc_t,                                           # (F, Kp)
        "mean": mean_p,                                         # (1, Kp)
        "istd": istd_p,                                         # (1, Kp)
        "wg_t": wg_t,                                           # (Kp, Cp)
        "b_g": bg_p,                                            # (1, Cp)
        "F": F, "K": K, "Cout": Cout, "HW": hw,
        "mxu_dtype": mxu_dtype,
    }


# -----------------------------------------------------------------------------
# Forward wrapper
# -----------------------------------------------------------------------------
def cbm_forward(x_nchw, prep, *, tb_max=128):
    """Returns (logits, proj_c) exactly like CBM_model.forward."""
    N, Cin, H, W = x_nchw.shape
    HW = H * W
    if HW != prep["HW"]:
        raise ValueError("prepare_params was built for a different HW")
    HWp = _round_up(HW, 128)               # lane-dense pixel axis
    F, K, Cout = prep["F"], prep["K"], prep["Cout"]
    Kp = prep["wc_t"].shape[1]
    Cp = prep["wg_t"].shape[1]

    # Batch tile: multiple of 8 (sublane-legal), capped at tb_max; always at
    # least 2 grid steps so v7x's second TensorCore gets work and the x-tile
    # DMA overlaps compute.  (Tiny batches trade padded compute for that.)
    tb = max(8, min(tb_max, _round_up((N + 1) // 2, 8)))
    n_pad = _round_up(N, tb)
    if n_pad // tb < 2:
        n_pad = 2 * tb
    num_tiles = n_pad // tb

    # (N, Cin, H, W) -> (N, Cin, HW): a free reshape — no HBM relayout pass.
    # Zero-pad batch to the tile grid and pixels to a multiple of 128 only
    # when needed (pad pixels are excluded from the pool inside the kernel).
    x = x_nchw.reshape(N, Cin, HW).astype(prep["mxu_dtype"])
    if n_pad != N or HWp != HW:
        x = jnp.pad(x, ((0, n_pad - N), (0, 0), (0, HWp - HW)))

    # Explicit VMEM budget (defaults: 16 MiB on v5e, 32 MiB on v6e/v7x scoped;
    # v7x physical is only 64 MiB).  Rough double-buffered footprint estimate.
    def _nb(a):
        return int(a.size) * a.dtype.itemsize
    weight_bytes = sum(_nb(prep[k]) for k in
                       ("wt_conv", "b_conv", "wc_t", "mean", "istd",
                        "wg_t", "b_g"))
    est = (2 * tb * Cin * HWp * x.dtype.itemsize     # x tile (double-buffered)
           + 2 * weight_bytes                        # resident weights
           + 2 * tb * (Kp + Cp) * 4                  # outputs
           + tb * F * 4                              # feats scratch
           + 2 * F * HWp * 4)                        # conv intermediate
    vmem_limit = int(min(max(3 * est, 32 * 2**20), 64 * 2**20))

    kernel = functools.partial(cbm_fused_kernel, hw=HW)

    logits_pad, proj_pad = pl.pallas_call(
        kernel,
        out_shape=(
            jax.ShapeDtypeStruct((n_pad, Cp), jnp.float32),
            jax.ShapeDtypeStruct((n_pad, Kp), jnp.float32),
        ),
        grid=(num_tiles,),
        in_specs=[
            pl.BlockSpec((tb, Cin, HWp), lambda i: (i, 0, 0)),  # x tile
            pl.BlockSpec((F, Cin), lambda i: (0, 0)),           # conv weight^T
            pl.BlockSpec((F, 1), lambda i: (0, 0)),             # conv bias
            pl.BlockSpec((F, Kp), lambda i: (0, 0)),            # (W_c^T)/HW
            pl.BlockSpec((1, Kp), lambda i: (0, 0)),            # proj_mean
            pl.BlockSpec((1, Kp), lambda i: (0, 0)),            # 1/proj_std
            pl.BlockSpec((Kp, Cp), lambda i: (0, 0)),           # W_g^T
            pl.BlockSpec((1, Cp), lambda i: (0, 0)),            # b_g
        ],
        out_specs=(
            pl.BlockSpec((tb, Cp), lambda i: (i, 0)),
            pl.BlockSpec((tb, Kp), lambda i: (i, 0)),
        ),
        scratch_shapes=[pltpu.VMEM((tb, F), jnp.float32)],
        compiler_params=pltpu.CompilerParams(
            dimension_semantics=("parallel",),
            vmem_limit_bytes=vmem_limit),
    )(x, prep["wt_conv"], prep["b_conv"], prep["wc_t"], prep["mean"],
      prep["istd"], prep["wg_t"], prep["b_g"])

    # Slice the lane-dense padded slabs back to the true (N, Cout)/(N, K).
    return logits_pad[:N, :Cout], proj_pad[:N, :K]


# -----------------------------------------------------------------------------
# Pure-JAX reference for correctness checking (mirrors the PyTorch forward).
# -----------------------------------------------------------------------------
def cbm_forward_ref(x_nchw, params):
    N, Cin, H, W = x_nchw.shape
    x = jnp.transpose(x_nchw, (0, 2, 3, 1)).reshape(N, H * W, Cin)
    a = jnp.maximum(jnp.einsum("nsc,cf->nsf", x, params["w_conv"])
                    + params["b_conv"][None], 0.0)
    feats = jnp.mean(a, axis=1)                               # (N, F)
    x1 = feats @ params["W_c"].T                              # (N, K)
    proj_c = (x1 - params["proj_mean"]) / params["proj_std"]
    logits = proj_c @ params["W_g"].T + params["b_g"]
    return logits, proj_c


if __name__ == "__main__":
    # Small, forward-consistent shapes.
    N, Cin, H, W = 2, 4, 16, 16      # input images (NCHW)
    F = 32                           # backbone feature dim
    K = 64                           # number of concepts (rows of W_c)
    Cout = 10                        # number of classes (rows of W_g)

    key = jax.random.PRNGKey(0)
    ks = jax.random.split(key, 8)

    x_nchw = jax.random.normal(ks[0], (N, Cin, H, W), jnp.float32)

    params = {
        # synthetic backbone (1x1 conv + bias)
        "w_conv": jax.random.normal(ks[1], (Cin, F), jnp.float32) * 0.1,
        "b_conv": jax.random.normal(ks[2], (1, F), jnp.float32) * 0.1,
        # W_c: (num_concepts, backbone_feat_dim), bias-free Linear
        "W_c": jax.random.normal(ks[3], (K, F), jnp.float32) * 0.1,
        # concept normalization stats (broadcast over batch)
        "proj_mean": jax.random.normal(ks[4], (1, K), jnp.float32) * 0.1,
        "proj_std": jax.random.uniform(ks[5], (1, K), jnp.float32, 0.5, 1.5),
        # final classifier W_g: (num_classes, num_concepts), bias b_g
        "W_g": jax.random.normal(ks[6], (Cout, K), jnp.float32) * 0.1,
        "b_g": jax.random.normal(ks[7], (1, Cout), jnp.float32) * 0.1,
    }

    # mxu_dtype=jnp.bfloat16 enables the bf16 MXU fast path (f32 accumulation,
    # halved weight VMEM/DMA); kept at f32 here to hold the 1e-4 tolerance.
    prep = prepare_params(params, hw=H * W, mxu_dtype=jnp.float32)

    logits, proj_c = cbm_forward(x_nchw, prep)
    jax.block_until_ready((logits, proj_c))
    logits_ref, proj_c_ref = cbm_forward_ref(x_nchw, params)

    assert logits.shape == (N, Cout) and proj_c.shape == (N, K)
    assert jnp.allclose(logits, logits_ref, atol=1e-4, rtol=1e-4)
    assert jnp.allclose(proj_c, proj_c_ref, atol=1e-4, rtol=1e-4)

    print("KERNEL_OK")
</pallas_src>

<mosaic_0001>
module attributes {stable_mosaic.version = 11 : i64} {
  func.func @cbm_fused_kernel(%arg0: i32, %arg1: memref<8x4x256xf32, #tpu.memory_space<vmem>>, %arg2: memref<32x4xf32, #tpu.memory_space<vmem>>, %arg3: memref<32x1xf32, #tpu.memory_space<vmem>>, %arg4: memref<32x128xf32, #tpu.memory_space<vmem>>, %arg5: memref<1x128xf32, #tpu.memory_space<vmem>>, %arg6: memref<1x128xf32, #tpu.memory_space<vmem>>, %arg7: memref<128x128xf32, #tpu.memory_space<vmem>>, %arg8: memref<1x128xf32, #tpu.memory_space<vmem>>, %arg9: memref<8x128xf32, #tpu.memory_space<vmem>>, %arg10: memref<8x128xf32, #tpu.memory_space<vmem>>, %arg11: memref<8x32xf32, #tpu.memory_space<vmem>>) attributes {dimension_semantics = [#tpu.dimension_semantics<parallel>], iteration_bounds = array<i64: 2>, scalar_prefetch = 0 : i64, scratch_operands = 1 : i64, tpu.core_type = #tpu.core_type<tc>, window_params = [{transform_indices = @transform_0, window_bounds = array<i64: 8, 4, 256>}, {pipeline_mode = #tpu.pipeline_mode<synchronous>, transform_indices = @transform_1, window_bounds = array<i64: 32, 4>}, {pipeline_mode = #tpu.pipeline_mode<synchronous>, transform_indices = @transform_2, window_bounds = array<i64: 32, 1>}, {pipeline_mode = #tpu.pipeline_mode<synchronous>, transform_indices = @transform_3, window_bounds = array<i64: 32, 128>}, {pipeline_mode = #tpu.pipeline_mode<synchronous>, transform_indices = @transform_4, window_bounds = array<i64: 1, 128>}, {pipeline_mode = #tpu.pipeline_mode<synchronous>, transform_indices = @transform_5, window_bounds = array<i64: 1, 128>}, {pipeline_mode = #tpu.pipeline_mode<synchronous>, transform_indices = @transform_6, window_bounds = array<i64: 128, 128>}, {pipeline_mode = #tpu.pipeline_mode<synchronous>, transform_indices = @transform_7, window_bounds = array<i64: 1, 128>}, {transform_indices = @transform_8, window_bounds = array<i64: 8, 128>}, {transform_indices = @transform_9, window_bounds = array<i64: 8, 128>}]} {
    %c0 = arith.constant 0 : index
    %c0_0 = arith.constant 0 : index
    %0 = vector.load %arg2[%c0, %c0_0] : memref<32x4xf32, #tpu.memory_space<vmem>>, vector<32x4xf32>
    %c0_1 = arith.constant 0 : index
    %c0_2 = arith.constant 0 : index
    %1 = vector.load %arg3[%c0_1, %c0_2] : memref<32x1xf32, #tpu.memory_space<vmem>>, vector<32x1xf32>
    %cst = arith.constant 1.000000e+00 : f32
    %2 = vector.broadcast %cst : f32 to vector<1x256xf32>
    %c0_i32 = arith.constant 0 : i32
    %c8_i32 = arith.constant 8 : i32
    %3 = arith.addi %c0_i32, %c8_i32 : i32
    %c1_i32 = arith.constant 1 : i32
    scf.for %arg12 = %c0_i32 to %3 step %c1_i32  : i32 {
      %20 = arith.index_cast %arg12 : i32 to index
      %c0_22 = arith.constant 0 : index
      %c0_23 = arith.constant 0 : index
      %21 = vector.load %arg1[%20, %c0_22, %c0_23] : memref<8x4x256xf32, #tpu.memory_space<vmem>>, vector<1x4x256xf32>
      %22 = vector.shape_cast %21 : vector<1x4x256xf32> to vector<4x256xf32>
      %cst_24 = arith.constant dense<0.000000e+00> : vector<32x256xf32>
      %23 = tpu.matmul %0, %22, %cst_24 {dimension_numbers = #tpu.dot_dimension_numbers<[1], [0], [0], [1], [0, 0, 1, 1], [], []>} : vector<32x4xf32>, vector<4x256xf32>, vector<32x256xf32> -> vector<32x256xf32>
      %24 = vector.broadcast %1 : vector<32x1xf32> to vector<32x256xf32>
      %25 = arith.addf %23, %24 : vector<32x256xf32>
      %cst_25 = arith.constant 0.000000e+00 : f32
      %26 = vector.broadcast %cst_25 : f32 to vector<32x256xf32>
      %27 = arith.maximumf %25, %26 : vector<32x256xf32>
      %cst_26 = arith.constant dense<0.000000e+00> : vector<1x32xf32>
      %28 = tpu.matmul %2, %27, %cst_26 {dimension_numbers = #tpu.dot_dimension_numbers<[1], [1], [0], [0], [0, 0, 1, 0], [], []>} : vector<1x256xf32>, vector<32x256xf32>, vector<1x32xf32> -> vector<1x32xf32>
      %29 = arith.index_cast %arg12 : i32 to index
      %c0_27 = arith.constant 0 : index
      %30 = vector.load %arg11[%29, %c0_27] : memref<8x32xf32, #tpu.memory_space<vmem>>, vector<1x32xf32>
      tpu.vector_store %arg11[%29, %c0_27], %28 {strides = array<i32>} : memref<8x32xf32, #tpu.memory_space<vmem>>, vector<1x32xf32>,
    }
    %c8_i32_3 = arith.constant 8 : i32
    %c0_4 = arith.constant 0 : index
    %c0_5 = arith.constant 0 : index
    %4 = vector.load %arg11[%c0_4, %c0_5] : memref<8x32xf32, #tpu.memory_space<vmem>>, vector<8x32xf32>
    %c0_6 = arith.constant 0 : index
    %c0_7 = arith.constant 0 : index
    %5 = vector.load %arg4[%c0_6, %c0_7] : memref<32x128xf32, #tpu.memory_space<vmem>>, vector<32x128xf32>
    %cst_8 = arith.constant dense<0.000000e+00> : vector<8x128xf32>
    %6 = tpu.matmul %4, %5, %cst_8 {dimension_numbers = #tpu.dot_dimension_numbers<[1], [0], [0], [1], [0, 0, 1, 1], [], []>} : vector<8x32xf32>, vector<32x128xf32>, vector<8x128xf32> -> vector<8x128xf32>
    %c0_9 = arith.constant 0 : index
    %c0_10 = arith.constant 0 : index
    %7 = vector.load %arg5[%c0_9, %c0_10] : memref<1x128xf32, #tpu.memory_space<vmem>>, vector<1x128xf32>
    %8 = vector.broadcast %7 : vector<1x128xf32> to vector<8x128xf32>
    %9 = arith.subf %6, %8 : vector<8x128xf32>
    %c0_11 = arith.constant 0 : index
    %c0_12 = arith.constant 0 : index
    %10 = vector.load %arg6[%c0_11, %c0_12] : memref<1x128xf32, #tpu.memory_space<vmem>>, vector<1x128xf32>
    %11 = vector.broadcast %10 : vector<1x128xf32> to vector<8x128xf32>
    %12 = arith.mulf %9, %11 : vector<8x128xf32>
    %c0_13 = arith.constant 0 : index
    %c0_14 = arith.constant 0 : index
    %13 = vector.load %arg10[%c0_13, %c0_14] : memref<8x128xf32, #tpu.memory_space<vmem>>, vector<8x128xf32>
    tpu.vector_store %arg10[%c0_13, %c0_14], %12 {strides = array<i32>} : memref<8x128xf32, #tpu.memory_space<vmem>>, vector<8x128xf32>,
    %c0_15 = arith.constant 0 : index
    %c0_16 = arith.constant 0 : index
    %14 = vector.load %arg7[%c0_15, %c0_16] : memref<128x128xf32, #tpu.memory_space<vmem>>, vector<128x128xf32>
    %cst_17 = arith.constant dense<0.000000e+00> : vector<8x128xf32>
    %15 = tpu.matmul %12, %14, %cst_17 {dimension_numbers = #tpu.dot_dimension_numbers<[1], [0], [0], [1], [0, 0, 1, 1], [], []>} : vector<8x128xf32>, vector<128x128xf32>, vector<8x128xf32> -> vector<8x128xf32>
    %c0_18 = arith.constant 0 : index
    %c0_19 = arith.constant 0 : index
    %16 = vector.load %arg8[%c0_18, %c0_19] : memref<1x128xf32, #tpu.memory_space<vmem>>, vector<1x128xf32>
    %17 = vector.broadcast %16 : vector<1x128xf32> to vector<8x128xf32>
    %18 = arith.addf %15, %17 : vector<8x128xf32>
    %c0_20 = arith.constant 0 : index
    %c0_21 = arith.constant 0 : index
    %19 = vector.load %arg9[%c0_20, %c0_21] : memref<8x128xf32, #tpu.memory_space<vmem>>, vector<8x128xf32>
    tpu.vector_store %arg9[%c0_20, %c0_21], %18 {strides = array<i32>} : memref<8x128xf32, #tpu.memory_space<vmem>>, vector<8x128xf32>,
    return
  }
  func.func @transform_0(%arg0: i32) -> (i32, i32, i32) {
    %c0_i32 = arith.constant 0 : i32
    %c0_i32_0 = arith.constant 0 : i32
    %c0_i32_1 = arith.constant 0 : i32
    return %arg0, %c0_i32, %c0_i32_0 : i32, i32, i32
  }
  func.func @transform_1(%arg0: i32) -> (i32, i32) {
    %c0_i32 = arith.constant 0 : i32
    %c0_i32_0 = arith.constant 0 : i32
    %c0_i32_1 = arith.constant 0 : i32
    return %c0_i32, %c0_i32_0 : i32, i32
  }
  func.func @transform_2(%arg0: i32) -> (i32, i32) {
    %c0_i32 = arith.constant 0 : i32
    %c0_i32_0 = arith.constant 0 : i32
    %c0_i32_1 = arith.constant 0 : i32
    return %c0_i32, %c0_i32_0 : i32, i32
  }
  func.func @transform_3(%arg0: i32) -> (i32, i32) {
    %c0_i32 = arith.constant 0 : i32
    %c0_i32_0 = arith.constant 0 : i32
    %c0_i32_1 = arith.constant 0 : i32
    return %c0_i32, %c0_i32_0 : i32, i32
  }
  func.func @transform_4(%arg0: i32) -> (i32, i32) {
    %c0_i32 = arith.constant 0 : i32
    %c0_i32_0 = arith.constant 0 : i32
    %c0_i32_1 = arith.constant 0 : i32
    return %c0_i32, %c0_i32_0 : i32, i32
  }
  func.func @transform_5(%arg0: i32) -> (i32, i32) {
    %c0_i32 = arith.constant 0 : i32
    %c0_i32_0 = arith.constant 0 : i32
    %c0_i32_1 = arith.constant 0 : i32
    return %c0_i32, %c0_i32_0 : i32, i32
  }
  func.func @transform_6(%arg0: i32) -> (i32, i32) {
    %c0_i32 = arith.constant 0 : i32
    %c0_i32_0 = arith.constant 0 : i32
    %c0_i32_1 = arith.constant 0 : i32
    return %c0_i32, %c0_i32_0 : i32, i32
  }
  func.func @transform_7(%arg0: i32) -> (i32, i32) {
    %c0_i32 = arith.constant 0 : i32
    %c0_i32_0 = arith.constant 0 : i32
    %c0_i32_1 = arith.constant 0 : i32
    return %c0_i32, %c0_i32_0 : i32, i32
  }
  func.func @transform_8(%arg0: i32) -> (i32, i32) {
    %c0_i32 = arith.constant 0 : i32
    %c0_i32_0 = arith.constant 0 : i32
    return %arg0, %c0_i32 : i32, i32
  }
  func.func @transform_9(%arg0: i32) -> (i32, i32) {
    %c0_i32 = arith.constant 0 : i32
    %c0_i32_0 = arith.constant 0 : i32
    return %arg0, %c0_i32 : i32, i32
  }
}

</mosaic_0001>

<llo_original>
// kernel: tpu_custom_call.1
$region0: #{tpu_custom_call.1}
  #allocation0 [shape = 'u32[]', space=smem, size = 0x4, offset = 0x4, fixed_abs, tag = 'smem constant byte address 0x4 - core index']
  #allocation1 [shape = 'u32[144,128]{1,0:T(1,128)}', space=vmem, size = 0x12000, scoped, tag = 'internal scratch']
  #allocation2 [shape = 'f32[8,32]{1,0:T(8,128)}', space=vmem, size = 0x1000, scoped, tag = 'scratch operand']
  %s0 = inlined_call_operand.hbm [shape: f32[16,4,256], index: 0, kind: input, shape index: {}]
  %s1 = inlined_call_operand.vmem [shape: f32[32,4], index: 1, kind: input, shape index: {}]
  %s2 = inlined_call_operand.vmem [shape: f32[32,1], index: 2, kind: input, shape index: {}]
  %s3 = inlined_call_operand.vmem [shape: f32[32,128], index: 3, kind: input, shape index: {}]
  %s4 = inlined_call_operand.vmem [shape: f32[1,128], index: 4, kind: input, shape index: {}]
  %s5 = inlined_call_operand.vmem [shape: f32[1,128], index: 5, kind: input, shape index: {}]
  %s6 = inlined_call_operand.hbm [shape: f32[128,128], index: 6, kind: input, shape index: {}]
  %s7 = inlined_call_operand.vmem [shape: f32[1,128], index: 7, kind: input, shape index: {}]
  %s8 = inlined_call_operand.hbm [shape: f32[16,128], index: 8, kind: output, shape index: {0}]
  %s9 = inlined_call_operand.hbm [shape: f32[16,128], index: 9, kind: output, shape index: {1}]
  %10 = xla_tuple %s8, %s9
  %s11 = sld [smem:[#allocation0]]
  $region88: #{tpu_custom_call.1} parent=0
    _
  %s13 = ssub.s32 1, %s11
  %s14 = scalar_select 0, %s13, %s11
  $region1: #{tpu_custom_call.1} parent=0
    #allocation3 [shape = 'u8[65536]{0}', space=vmem, size = 0x10000, scoped, tag = 'input window, operand 0']
    #allocation4 [shape = 's32[2]{0}', space=sflag, size = 0x8, scoped, tag = 'scoped memory for tpu_custom_call.1']
    #allocation5 [shape = 's32[2]{0}', space=sflag, size = 0x8, scoped, tag = 'scoped memory for tpu_custom_call.1']
    #allocation6 [shape = 'u8[65536]{0}', space=vmem, size = 0x10000, scoped, tag = 'input window, operand 6, single buffered']
    #allocation7 [shape = 's32[1]{0}', space=sflag, size = 0x4, scoped, tag = 'scoped memory for tpu_custom_call.1']
    #allocation8 [shape = 'u8[8192]{0}', space=vmem, size = 0x2000, scoped, tag = 'output window, operand 0']
    #allocation9 [shape = 'u8[8192]{0}', space=vmem, size = 0x2000, scoped, tag = 'output window, operand 1']
    #allocation10 [shape = 's32[2]{0}', space=sflag, size = 0x8, scoped, tag = 'scoped memory for tpu_custom_call.1']
    %15 = vsyncpa [#allocation4], 0
    %s16 = scalar_lea.sflag [#allocation4], 1
    %17 = vsyncpa %s16, 0
    %18 = vsyncpa [#allocation7], 0
    %19 = vsyncpa [#allocation5], 0
    %s20 = scalar_lea.sflag [#allocation5], 1
    %21 = vsyncpa %s20, 0
    %22 = vsyncpa [#allocation10], 0
    %s23 = scalar_lea.sflag [#allocation10], 1
    %24 = vsyncpa %s23, 0
    loop: start=0, step=1, limit=4
    $region2: #{tpu_custom_call.1} parent=1 // loop_pre_header
      _
    $region3: #{tpu_custom_call.1} parent=1 // loop_header
      %s26 = sphi 0, %s30
      %p27 = scmp.ge.s32.totalorder %s26, 4
      %s36 = sphi 0, %s38
      %s39 = sphi 0, %s36
      %s40 = sphi 0, %s39
      %s56 = sphi 0, %s40
      %s60 = sphi 0, %s60
      %s62 = sphi 0, %s60
      %s63 = sphi 0, %s62
      %s77 = sphi 0, %s63
      %s81 = sphi 0, %s81
      %s83 = sphi 0, %s81
      %s84 = sphi 0, %s83
      %s98 = sphi 0, %s84
      %s102 = sphi 0, %s102
      %s104 = sphi 0, %s102
      %s105 = sphi 0, %s104
      %s119 = sphi 0, %s105
      %s123 = sphi 0, %s123
      %s125 = sphi 0, %s123
      %s126 = sphi 0, %s125
      %s140 = sphi 0, %s126
      %s144 = sphi 0, %s144
      %s146 = sphi 0, %s144
      %s147 = sphi 0, %s146
      %s161 = sphi 0, %s147
      %s165 = sphi 0, %s165
      %s167 = sphi 0, %s165
      %s168 = sphi 0, %s167
      %s182 = sphi 0, %s168
      %s186 = sphi 0, %s186
      %s188 = sphi 0, %s186
      %s189 = sphi 0, %s188
      %s203 = sphi 0, %s189
      %s209 = sphi 0, %s211
      %s212 = sphi 0, %s209
      %s213 = sphi 0, %s212
      %s229 = sphi 0, %s213
      %s235 = sphi 0, %s237
      %s238 = sphi 0, %s235
      %s239 = sphi 0, %s238
      %s255 = sphi 0, %s239
    $region4: #{tpu_custom_call.1} parent=1 // loop_header_branch
      %29 = sbr.rel (%p27) target = $region8
    $region5: #{tpu_custom_call.1} parent=1 // loop_body
      %s31 = ssub.s32 %s26, 1
      %s32 = ssub.s32 %s26, 2
      %s33 = sadd.s32 %s26, 1
      %s34 = ssub.s32 %s26, %s33
      %p35 = scmp.eq.s32.totalorder %s34, 0
      %s37 = sadd.s32 %s36, 1
      %s38 = scalar_select %p35, %s36, %s37
      %p41 = pneg %p35
      %p42 = scmp.eq.s32.totalorder %s26, 1
      %p43 = por %p41, %p42
      %p44 = scmp.ne.s32.totalorder %s36, %s39
      %p45 = scmp.eq.s32.totalorder %s26, 0
      %p46 = por %p44, %p45
      %p47 = scmp.ne.s32.totalorder %s36, %s39
      %p48 = scmp.eq.s32.totalorder %s31, 1
      %p49 = por %p47, %p48
      %p50 = scmp.ne.s32.totalorder %s39, %s40
      %p51 = scmp.eq.s32.totalorder %s31, 0
      %p52 = por %p50, %p51
      %p53 = scmp.ne.s32.totalorder %s39, %s40
      %p54 = scmp.eq.s32.totalorder %s32, 1
      %p55 = por %p53, %p54
      %p57 = scmp.ne.s32.totalorder %s40, %s56
      %p58 = scmp.eq.s32.totalorder %s32, 0
      %p59 = por %p57, %p58
      %s61 = sadd.s32 %s60, 1
      %p64 = scmp.eq.s32.totalorder %s26, 1
      %p65 = scmp.ne.s32.totalorder %s60, %s62
      %p66 = scmp.eq.s32.totalorder %s26, 0
      %p67 = por %p65, %p66
      %p68 = scmp.ne.s32.totalorder %s60, %s62
      %p69 = scmp.eq.s32.totalorder %s31, 1
      %p70 = por %p68, %p69
      %p71 = scmp.ne.s32.totalorder %s62, %s63
      %p72 = scmp.eq.s32.totalorder %s31, 0
      %p73 = por %p71, %p72
      %p74 = scmp.ne.s32.totalorder %s62, %s63
      %p75 = scmp.eq.s32.totalorder %s32, 1
      %p76 = por %p74, %p75
      %p78 = scmp.ne.s32.totalorder %s63, %s77
      %p79 = scmp.eq.s32.totalorder %s32, 0
      %p80 = por %p78, %p79
      %s82 = sadd.s32 %s81, 1
      %p85 = scmp.eq.s32.totalorder %s26, 1
      %p86 = scmp.ne.s32.totalorder %s81, %s83
      %p87 = scmp.eq.s32.totalorder %s26, 0
      %p88 = por %p86, %p87
      %p89 = scmp.ne.s32.totalorder %s81, %s83
      %p90 = scmp.eq.s32.totalorder %s31, 1
      %p91 = por %p89, %p90
      %p92 = scmp.ne.s32.totalorder %s83, %s84
      %p93 = scmp.eq.s32.totalorder %s31, 0
      %p94 = por %p92, %p93
      %p95 = scmp.ne.s32.totalorder %s83, %s84
      %p96 = scmp.eq.s32.totalorder %s32, 1
      %p97 = por %p95, %p96
      %p99 = scmp.ne.s32.totalorder %s84, %s98
      %p100 = scmp.eq.s32.totalorder %s32, 0
      %p101 = por %p99, %p100
      %s103 = sadd.s32 %s102, 1
      %p106 = scmp.eq.s32.totalorder %s26, 1
      %p107 = scmp.ne.s32.totalorder %s102, %s104
      %p108 = scmp.eq.s32.totalorder %s26, 0
      %p109 = por %p107, %p108
      %p110 = scmp.ne.s32.totalorder %s102, %s104
      %p111 = scmp.eq.s32.totalorder %s31, 1
      %p112 = por %p110, %p111
      %p113 = scmp.ne.s32.totalorder %s104, %s105
      %p114 = scmp.eq.s32.totalorder %s31, 0
      %p115 = por %p113, %p114
      %p116 = scmp.ne.s32.totalorder %s104, %s105
      %p117 = scmp.eq.s32.totalorder %s32, 1
      %p118 = por %p116, %p117
      %p120 = scmp.ne.s32.totalorder %s105, %s119
      %p121 = scmp.eq.s32.totalorder %s32, 0
      %p122 = por %p120, %p121
      %s124 = sadd.s32 %s123, 1
      %p127 = scmp.eq.s32.totalorder %s26, 1
      %p128 = scmp.ne.s32.totalorder %s123, %s125
      %p129 = scmp.eq.s32.totalorder %s26, 0
      %p130 = por %p128, %p129
      %p131 = scmp.ne.s32.totalorder %s123, %s125
      %p132 = scmp.eq.s32.totalorder %s31, 1
      %p133 = por %p131, %p132
      %p134 = scmp.ne.s32.totalorder %s125, %s126
      %p135 = scmp.eq.s32.totalorder %s31, 0
      %p136 = por %p134, %p135
      %p137 = scmp.ne.s32.totalorder %s125, %s126
      %p138 = scmp.eq.s32.totalorder %s32, 1
      %p139 = por %p137, %p138
      %p141 = scmp.ne.s32.totalorder %s126, %s140
      %p142 = scmp.eq.s32.totalorder %s32, 0
      %p143 = por %p141, %p142
      %s145 = sadd.s32 %s144, 1
      %p148 = scmp.eq.s32.totalorder %s26, 1
      %p149 = scmp.ne.s32.totalorder %s144, %s146
      %p150 = scmp.eq.s32.totalorder %s26, 0
      %p151 = por %p149, %p150
      %p152 = scmp.ne.s32.totalorder %s144, %s146
      %p153 = scmp.eq.s32.totalorder %s31, 1
      %p154 = por %p152, %p153
      %p155 = scmp.ne.s32.totalorder %s146, %s147
      %p156 = scmp.eq.s32.totalorder %s31, 0
      %p157 = por %p155, %p156
      %p158 = scmp.ne.s32.totalorder %s146, %s147
      %p159 = scmp.eq.s32.totalorder %s32, 1
      %p160 = por %p158, %p159
      %p162 = scmp.ne.s32.totalorder %s147, %s161
      %p163 = scmp.eq.s32.totalorder %s32, 0
      %p164 = por %p162, %p163
      %s166 = sadd.s32 %s165, 1
      %p169 = scmp.eq.s32.totalorder %s26, 1
      %p170 = scmp.ne.s32.totalorder %s165, %s167
      %p171 = scmp.eq.s32.totalorder %s26, 0
      %p172 = por %p170, %p171
      %p173 = scmp.ne.s32.totalorder %s165, %s167
      %p174 = scmp.eq.s32.totalorder %s31, 1
      %p175 = por %p173, %p174
      %p176 = scmp.ne.s32.totalorder %s167, %s168
      %p177 = scmp.eq.s32.totalorder %s31, 0
      %p178 = por %p176, %p177
      %p179 = scmp.ne.s32.totalorder %s167, %s168
      %p180 = scmp.eq.s32.totalorder %s32, 1
      %p181 = por %p179, %p180
      %p183 = scmp.ne.s32.totalorder %s168, %s182
      %p184 = scmp.eq.s32.totalorder %s32, 0
      %p185 = por %p183, %p184
      %s187 = sadd.s32 %s186, 1
      %p190 = scmp.eq.s32.totalorder %s26, 1
      %p191 = scmp.ne.s32.totalorder %s186, %s188
      %p192 = scmp.eq.s32.totalorder %s26, 0
      %p193 = por %p191, %p192
      %p194 = scmp.ne.s32.totalorder %s186, %s188
      %p195 = scmp.eq.s32.totalorder %s31, 1
      %p196 = por %p194, %p195
      %p197 = scmp.ne.s32.totalorder %s188, %s189
      %p198 = scmp.eq.s32.totalorder %s31, 0
      %p199 = por %p197, %p198
      %p200 = scmp.ne.s32.totalorder %s188, %s189
      %p201 = scmp.eq.s32.totalorder %s32, 1
      %p202 = por %p200, %p201
      %p204 = scmp.ne.s32.totalorder %s189, %s203
      %p205 = scmp.eq.s32.totalorder %s32, 0
      %p206 = por %p204, %p205
      %s207 = ssub.s32 %s26, %s33
      %p208 = scmp.eq.s32.totalorder %s207, 0
      %s210 = sadd.s32 %s209, 1
      %s211 = scalar_select %p208, %s209, %s210
      %p214 = pneg %p208
      %p215 = scmp.eq.s32.totalorder %s26, 1
      %p216 = por %p214, %p215
      %p217 = scmp.ne.s32.totalorder %s209, %s212
      %p218 = scmp.eq.s32.totalorder %s26, 0
      %p219 = por %p217, %p218
      %p220 = scmp.ne.s32.totalorder %s209, %s212
      %p221 = scmp.eq.s32.totalorder %s31, 1
      %p222 = por %p220, %p221
      %p223 = scmp.ne.s32.totalorder %s212, %s213
      %p224 = scmp.eq.s32.totalorder %s31, 0
      %p225 = por %p223, %p224
      %p226 = scmp.ne.s32.totalorder %s212, %s213
      %p227 = scmp.eq.s32.totalorder %s32, 1
      %p228 = por %p226, %p227
      %p230 = scmp.ne.s32.totalorder %s213, %s229
      %p231 = scmp.eq.s32.totalorder %s32, 0
      %p232 = por %p230, %p231
      %s233 = ssub.s32 %s26, %s33
      %p234 = scmp.eq.s32.totalorder %s233, 0
      %s236 = sadd.s32 %s235, 1
      %s237 = scalar_select %p234, %s235, %s236
      %p240 = pneg %p234
      %p241 = scmp.eq.s32.totalorder %s26, 1
      %p242 = por %p240, %p241
      %p243 = scmp.ne.s32.totalorder %s235, %s238
      %p244 = scmp.eq.s32.totalorder %s26, 0
      %p245 = por %p243, %p244
      %p246 = scmp.ne.s32.totalorder %s235, %s238
      %p247 = scmp.eq.s32.totalorder %s31, 1
      %p248 = por %p246, %p247
      %p249 = scmp.ne.s32.totalorder %s238, %s239
      %p250 = scmp.eq.s32.totalorder %s31, 0
      %p251 = por %p249, %p250
      %p252 = scmp.ne.s32.totalorder %s238, %s239
      %p253 = scmp.eq.s32.totalorder %s32, 1
      %p254 = por %p252, %p253
      %p256 = scmp.ne.s32.totalorder %s239, %s255
      %p257 = scmp.eq.s32.totalorder %s32, 0
      %p258 = por %p256, %p257
      %p259 = scmp.le.s32.totalorder 1, %s26
      %p260 = scmp.lt.s32.totalorder %s26, 3
      %p261 = pnand %p259, %p260
      %p262 = pneg %p261
      // Predicated region
      $region9: #{tpu_custom_call.1} parent=5 // pred_check
        _
      $region10: #{tpu_custom_call.1} parent=5 // pred_check_branch
        %264 = sbr.rel (%p261) target = $region12
      $region11: #{tpu_custom_call.1} parent=5 // pred_region
        %s265 = ssub.s32 %s26, 1
        // Predicated region
        $region13: #{tpu_custom_call.1} parent=11 // pred_check
          %p266 = pneg %p73
        $region14: #{tpu_custom_call.1} parent=11 // pred_check_branch
          %268 = sbr.rel (%p266) target = $region16
        $region15: #{tpu_custom_call.1} parent=11 // pred_region
          _
        $region16: #{tpu_custom_call.1} parent=11 // pred_fallthru
          _
        // Predicated region
        $region17: #{tpu_custom_call.1} parent=11 // pred_check
          %p269 = pneg %p94
        $region18: #{tpu_custom_call.1} parent=11 // pred_check_branch
          %271 = sbr.rel (%p269) target = $region20
        $region19: #{tpu_custom_call.1} parent=11 // pred_region
          _
        $region20: #{tpu_custom_call.1} parent=11 // pred_fallthru
          _
        // Predicated region
        $region21: #{tpu_custom_call.1} parent=11 // pred_check
          %p272 = pneg %p115
        $region22: #{tpu_custom_call.1} parent=11 // pred_check_branch
          %274 = sbr.rel (%p272) target = $region24
        $region23: #{tpu_custom_call.1} parent=11 // pred_region
          _
        $region24: #{tpu_custom_call.1} parent=11 // pred_fallthru
          _
        // Predicated region
        $region25: #{tpu_custom_call.1} parent=11 // pred_check
          %p275 = pneg %p136
        $region26: #{tpu_custom_call.1} parent=11 // pred_check_branch
          %277 = sbr.rel (%p275) target = $region28
        $region27: #{tpu_custom_call.1} parent=11 // pred_region
          _
        $region28: #{tpu_custom_call.1} parent=11 // pred_fallthru
          _
        // Predicated region
        $region29: #{tpu_custom_call.1} parent=11 // pred_check
          %p278 = pneg %p157
        $region30: #{tpu_custom_call.1} parent=11 // pred_check_branch
          %280 = sbr.rel (%p278) target = $region32
        $region31: #{tpu_custom_call.1} parent=11 // pred_region
          _
        $region32: #{tpu_custom_call.1} parent=11 // pred_fallthru
          _
        // Predicated region
        $region33: #{tpu_custom_call.1} parent=11 // pred_check
          %p281 = pneg %p178
        $region34: #{tpu_custom_call.1} parent=11 // pred_check_branch
          %283 = sbr.rel (%p281) target = $region36
        $region35: #{tpu_custom_call.1} parent=11 // pred_region
          %s285 = ssub.s32 2048, 2048
          %286 = vsyncadd [#allocation7], %s285
          %s287 = sshll.u32 [#allocation6], 4
          %s288 = int_to_ptr.vmem [resolvable:$true] %s287
          %293 = dma.hbm_to_vmem [thread:$0]  %s6, 2048, %s288, [#allocation7], 128, 128, 8
        $region36: #{tpu_custom_call.1} parent=11 // pred_fallthru
          _
        // Predicated region
        $region37: #{tpu_custom_call.1} parent=11 // pred_check
          %p294 = pneg %p199
        $region38: #{tpu_custom_call.1} parent=11 // pred_check_branch
          %296 = sbr.rel (%p294) target = $region40
        $region39: #{tpu_custom_call.1} parent=11 // pred_region
          _
        $region40: #{tpu_custom_call.1} parent=11 // pred_fallthru
          _
      $region12: #{tpu_custom_call.1} parent=5 // pred_fallthru
        _
      %p297 = scmp.lt.s32.totalorder %s26, 2
      // Predicated region
      $region41: #{tpu_custom_call.1} parent=5 // pred_check
        %p298 = pneg %p297
      $region42: #{tpu_custom_call.1} parent=5 // pred_check_branch
        %300 = sbr.rel (%p298) target = $region44
      $region43: #{tpu_custom_call.1} parent=5 // pred_region
        // Predicated region
        $region45: #{tpu_custom_call.1} parent=43 // pred_check
          %p301 = pneg %p46
        $region46: #{tpu_custom_call.1} parent=43 // pred_check_branch
          %303 = sbr.rel (%p301) target = $region48
        $region47: #{tpu_custom_call.1} parent=43 // pred_region
          %s304 = sand.u32 %s36, 1
          %s305 = scalar_lea.sflag [#allocation4], %s304
          %s306 = sand.u32 %s36, 1
          %s307 = smul.addr %s306, 64
          %s308 = scalar_lea.vmem [#allocation3], %s307
          %s309 = smul.u32 8, %s26
          %s311 = ssub.s32 1024, 1024
          %312 = vsyncadd %s305, %s311
          %s313 = smul.addr %s309, 2
          %s314 = smul.addr %s313, 64
          %s315 = scalar_lea.hbm %s0, %s314
          %s316 = sshll.u32 %s308, 4
          %s317 = int_to_ptr.vmem [resolvable:$true] %s316
          %322 = dma.hbm_to_vmem [thread:$0]  %s315, 1024, %s317, %s305, 128, 128, 8
        $region48: #{tpu_custom_call.1} parent=43 // pred_fallthru
          _
      $region44: #{tpu_custom_call.1} parent=5 // pred_fallthru
        _
      %p323 = scmp.le.s32.totalorder 1, %s26
      %p324 = scmp.lt.s32.totalorder %s26, 3
      %p325 = pnand %p323, %p324
      %p326 = pneg %p325
      // Predicated region
      $region49: #{tpu_custom_call.1} parent=5 // pred_check
        _
      $region50: #{tpu_custom_call.1} parent=5 // pred_check_branch
        %328 = sbr.rel (%p325) target = $region52
      $region51: #{tpu_custom_call.1} parent=5 // pred_region
        %s329 = ssub.s32 %s26, 1
        %s330 = sand.u32 %s39, 1
        %s331 = scalar_lea.sflag [#allocation4], %s330
        %s332 = sand.u32 %s39, 1
        %s333 = smul.addr %s332, 64
        %s334 = scalar_lea.vmem [#allocation3], %s333
        // Predicated region
        $region53: #{tpu_custom_call.1} parent=51 // pred_check
          %p335 = pneg %p52
        $region54: #{tpu_custom_call.1} parent=51 // pred_check_branch
          %337 = sbr.rel (%p335) target = $region56
        $region55: #{tpu_custom_call.1} parent=51 // pred_region
          %338 = dma.done %s331, 1024
        $region56: #{tpu_custom_call.1} parent=51 // pred_fallthru
          _
        // Predicated region
        $region57: #{tpu_custom_call.1} parent=51 // pred_check
          %p339 = pneg %p178
        $region58: #{tpu_custom_call.1} parent=51 // pred_check_branch
          %341 = sbr.rel (%p339) target = $region60
        $region59: #{tpu_custom_call.1} parent=51 // pred_region
          %342 = dma.done [#allocation7], 2048
        $region60: #{tpu_custom_call.1} parent=51 // pred_fallthru
          _
        %s343 = sand.u32 %s39, 1
        %s344 = scalar_lea.sflag [#allocation4], %s343
        %s345 = sand.u32 %s39, 1
        %s346 = smul.addr %s345, 64
        %s347 = scalar_lea.vmem [#allocation3], %s346
        %p348 = pneg %p52
        %p349 = pneg %p49
        %p350 = pneg %p73
        %p351 = pneg %p70
        %p352 = pneg %p94
        %p353 = pneg %p91
        %p354 = pneg %p115
        %p355 = pneg %p112
        %p356 = pneg %p136
        %p357 = pneg %p133
        %p358 = pneg %p157
        %p359 = pneg %p154
        %p360 = pneg %p178
        %p361 = pneg %p175
        %p362 = pneg %p199
        %p363 = pneg %p196
        %p364 = pneg %p225
        %p365 = pneg %p222
        %s366 = sand.u32 %s212, 1
        %s367 = scalar_lea.sflag [#allocation5], %s366
        %s368 = sand.u32 %s212, 1
        %s369 = smul.addr %s368, 8
        %s370 = scalar_lea.vmem [#allocation8], %s369
        %p371 = pneg %p251
        %p372 = pneg %p248
        %s373 = sand.u32 %s238, 1
        %s374 = scalar_lea.sflag [#allocation10], %s373
        %s375 = sand.u32 %s238, 1
        %s376 = smul.addr %s375, 8
        %s377 = scalar_lea.vmem [#allocation9], %s376
        %s378 = smul.u32 8, %s31
        %v379 = vld [vmem:[%s1] sm:$0xff]
        %v380 = vld [vmem:[%s1 + $0x8] sm:$0xff]
        %v381 = vld [vmem:[%s1 + $0x10] sm:$0xff]
        %v382 = vld [vmem:[%s1 + $0x18] sm:$0xff]
        %v383 = vld [vmem:[%s2] sm:$0xff]
        %v384 = vld [vmem:[%s2 + $0x8] sm:$0xff]
        %v385 = vld [vmem:[%s2 + $0x10] sm:$0xff]
        %v386 = vld [vmem:[%s2 + $0x18] sm:$0xff]
        loop: start=0, step=1, limit=8
        $region61: #{tpu_custom_call.1} parent=51 // loop_pre_header
          _
        $region62: #{tpu_custom_call.1} parent=51 // loop_header
          %s388 = sphi 0, %s392
          %p389 = scmp.ge.s32.totalorder %s388, 8
        $region63: #{tpu_custom_call.1} parent=51 // loop_header_branch
          %391 = sbr.rel (%p389) target = $region67
        $region64: #{tpu_custom_call.1} parent=51 // loop_body
          %s393 = smul.u32 %s388, 2
          %s394 = smul.addr %s393, 4
          %s395 = scalar_lea.vmem %s334, %s394 [#allocation3]
          %v396 = vld [vmem:[%s395] sm:$0xff]
          %398 = vset.pattern.permute.xlu0 0
          %399 = vperm.xlu0 %398, %v383
          %v400 = vpop.permute.xlu0 %399
          %403 = vset.pattern.permute.xlu0 0
          %404 = vperm.xlu0 %403, %v384
          %v405 = vpop.permute.xlu0 %404
          %408 = vset.pattern.permute.xlu0 0
          %409 = vperm.xlu0 %408, %v385
          %v410 = vpop.permute.xlu0 %409
          %413 = vset.pattern.permute.xlu0 0
          %414 = vperm.xlu0 %413, %v386
          %v415 = vpop.permute.xlu0 %414
          %v418 = vcombine.high %v396, %v396
          %vm419 = vcmask 31744
          %v421 = vsel %vm419, %v379, 0
          %v424 = vsel %vm419, %v380, 0
          %v427 = vsel %vm419, %v381, 0
          %v430 = vsel %vm419, %v382, 0
          %vm432 = vcmask 1043456
          %v433 = vsel %vm432, %v396, 0
          %v435 = vsel %vm432, %v418, 0
          %437 = vmatprep.subr.mxu0 %v435
          %438 = vmatpush1.msra.mxu0 %v433
          %439 = vmatprep.subr.mxu0 0.0
          %440 = vmatpush1.msra.mxu0 0.0
          %441 = vmatprep.subr.mxu0 0.0
          %442 = vmatpush1.msra.mxu0 0.0
          %443 = vmatprep.subr.mxu0 0.0
          %444 = vmatpush1.msra.mxu0 0.0
          %445 = vmatprep.subr.mxu0 0.0
          %446 = vmatpush1.msra.mxu0 0.0
          %447 = vmatprep.subr.mxu0 0.0
          %448 = vmatpush1.msra.mxu0 0.0
          %449 = vmatprep.subr.mxu0 0.0
          %450 = vmatpush1.msra.mxu0 0.0
          %451 = vmatprep.subr.mxu0 0.0
          %452 = vmatpush1.msra.mxu0 0.0
          %453 = vmatprep.subr.mxu0 0.0
          %454 = vmatpush1.msra.mxu0 0.0
          %455 = vmatprep.subr.mxu0 0.0
          %456 = vmatpush1.msra.mxu0 0.0
          %457 = vmatprep.subr.mxu0 0.0
          %458 = vmatpush1.msra.mxu0 0.0
          %459 = vmatprep.subr.mxu0 0.0
          %460 = vmatpush1.msra.mxu0 0.0
          %461 = vmatprep.subr.mxu0 0.0
          %462 = vmatpush1.msra.mxu0 0.0
          %463 = vmatprep.subr.mxu0 0.0
          %464 = vmatpush1.msra.mxu0 0.0
          %465 = vmatprep.subr.mxu0 0.0
          %466 = vmatpush1.msra.mxu0 0.0
          %467 = vmatprep.subr.mxu0 0.0
          %468 = vmatpush1.msra.mxu0 0.0
          %469 = vmatprep.subr.mxu0 0.0
          %470 = vmatpush1.msra.mxu0 0.0
          %471 = vmatprep.subr.mxu0 0.0
          %472 = vmatpush1.msra.mxu0 0.0
          %473 = vmatprep.subr.mxu0 0.0
          %474 = vmatpush1.msra.mxu0 0.0
          %475 = vmatprep.subr.mxu0 0.0
          %476 = vmatpush1.msra.mxu0 0.0
          %477 = vmatprep.subr.mxu0 0.0
          %478 = vmatpush1.msra.mxu0 0.0
          %479 = vmatprep.subr.mxu0 0.0
          %480 = vmatpush1.msra.mxu0 0.0
          %481 = vmatprep.subr.mxu0 0.0
          %482 = vmatpush1.msra.mxu0 0.0
          %483 = vmatprep.subr.mxu0 0.0
          %484 = vmatpush1.msra.mxu0 0.0
          %485 = vmatprep.subr.mxu0 0.0
          %486 = vmatpush1.msra.mxu0 0.0
          %487 = vmatprep.subr.mxu0 0.0
          %488 = vmatpush1.msra.mxu0 0.0
          %489 = vmatprep.subr.mxu0 0.0
          %490 = vmatpush1.msra.mxu0 0.0
          %491 = vmatprep.subr.mxu0 0.0
          %492 = vmatpush1.msra.mxu0 0.0
          %493 = vmatprep.subr.mxu0 0.0
          %494 = vmatpush1.msra.mxu0 0.0
          %495 = vmatprep.subr.mxu0 0.0
          %496 = vmatpush1.msra.mxu0 0.0
          %497 = vmatprep.subr.mxu0 0.0
          %498 = vmatpush1.msra.mxu0 0.0
          %499 = vmatprep.subr.mxu0 0.0
          %500 = vmatpush1.msra.mxu0 0.0
          %501 = vmatprep.mubr.f32.mxu0 0.0
          %502 = vmatmul.mubr.f32.gmra.mrb[0].mxu0 %v421
          %v503 = vpop.f32.mrb[0].mxu0
          %v504 = vadd.f32 %v400, %v503
          %v505 = vpop.f32.mrb[0].mxu0
          %v506 = vadd.f32 %v400, %v505
          %507 = vmatprep.mubr.f32.mxu0 0.0
          %508 = vmatmul.mubr.f32.gmra.mrb[0].mxu0 %v424
          %v509 = vpop.f32.mrb[0].mxu0
          %v510 = vadd.f32 %v405, %v509
          %v511 = vpop.f32.mrb[0].mxu0
          %v512 = vadd.f32 %v405, %v511
          %513 = vmatprep.mubr.f32.mxu0 0.0
          %514 = vmatmul.mubr.f32.gmra.mrb[0].mxu0 %v427
          %v515 = vpop.f32.mrb[0].mxu0
          %v516 = vadd.f32 %v410, %v515
          %v517 = vpop.f32.mrb[0].mxu0
          %v518 = vadd.f32 %v410, %v517
          %519 = vmatprep.mubr.f32.mxu0 0.0
          %520 = vmatmul.mubr.f32.gmra.mrb[0].mxu0 %v430
          %v521 = vpop.f32.mrb[0].mxu0
          %v522 = vadd.f32 %v415, %v521
          %v523 = vpop.f32.mrb[0].mxu0
          %v524 = vadd.f32 %v415, %v523
          %525 = vdwg.mxu0
          %v526 = vmax.f32 %v504, 0.0
          %v527 = vmax.f32 %v506, 0.0
          %v528 = vmax.f32 %v510, 0.0
          %v529 = vmax.f32 %v512, 0.0
          %v530 = vmax.f32 %v516, 0.0
          %v531 = vmax.f32 %v518, 0.0
          %v532 = vmax.f32 %v522, 0.0
          %v533 = vmax.f32 %v524, 0.0
          %534 = vmatprep.subr.mxu0 %v527
          %535 = vmatpush1.xpose.msra.mxu0 %v526
          %536 = vmatprep.subr.mxu0 %v529
          %537 = vmatpush1.xpose.msra.mxu0 %v528
          %538 = vmatprep.subr.mxu0 %v531
          %539 = vmatpush1.xpose.msra.mxu0 %v530
          %540 = vmatprep.subr.mxu0 %v533
          %541 = vmatpush1.xpose.msra.mxu0 %v532
          %542 = vmatprep.subr.mxu0 0.0
          %543 = vmatpush1.xpose.msra.mxu0 0.0
          %544 = vmatprep.subr.mxu0 0.0
          %545 = vmatpush1.xpose.msra.mxu0 0.0
          %546 = vmatprep.subr.mxu0 0.0
          %547 = vmatpush1.xpose.msra.mxu0 0.0
          %548 = vmatprep.subr.mxu0 0.0
          %549 = vmatpush1.xpose.msra.mxu0 0.0
          %550 = vmatprep.subr.mxu0 0.0
          %551 = vmatpush1.xpose.msra.mxu0 0.0
          %552 = vmatprep.subr.mxu0 0.0
          %553 = vmatpush1.xpose.msra.mxu0 0.0
          %554 = vmatprep.subr.mxu0 0.0
          %555 = vmatpush1.xpose.msra.mxu0 0.0
          %556 = vmatprep.subr.mxu0 0.0
          %557 = vmatpush1.xpose.msra.mxu0 0.0
          %558 = vmatprep.subr.mxu0 0.0
          %559 = vmatpush1.xpose.msra.mxu0 0.0
          %560 = vmatprep.subr.mxu0 0.0
          %561 = vmatpush1.xpose.msra.mxu0 0.0
          %562 = vmatprep.subr.mxu0 0.0
          %563 = vmatpush1.xpose.msra.mxu0 0.0
          %564 = vmatprep.subr.mxu0 0.0
          %565 = vmatpush1.xpose.msra.mxu0 0.0
          %566 = vmatprep.subr.mxu0 0.0
          %567 = vmatpush1.xpose.msra.mxu0 0.0
          %568 = vmatprep.subr.mxu0 0.0
          %569 = vmatpush1.xpose.msra.mxu0 0.0
          %570 = vmatprep.subr.mxu0 0.0
          %571 = vmatpush1.xpose.msra.mxu0 0.0
          %572 = vmatprep.subr.mxu0 0.0
          %573 = vmatpush1.xpose.msra.mxu0 0.0
          %574 = vmatprep.subr.mxu0 0.0
          %575 = vmatpush1.xpose.msra.mxu0 0.0
          %576 = vmatprep.subr.mxu0 0.0
          %577 = vmatpush1.xpose.msra.mxu0 0.0
          %578 = vmatprep.subr.mxu0 0.0
          %579 = vmatpush1.xpose.msra.mxu0 0.0
          %580 = vmatprep.subr.mxu0 0.0
          %581 = vmatpush1.xpose.msra.mxu0 0.0
          %582 = vmatprep.subr.mxu0 0.0
          %583 = vmatpush1.xpose.msra.mxu0 0.0
          %584 = vmatprep.subr.mxu0 0.0
          %585 = vmatpush1.xpose.msra.mxu0 0.0
          %586 = vmatprep.subr.mxu0 0.0
          %587 = vmatpush1.xpose.msra.mxu0 0.0
          %588 = vmatprep.subr.mxu0 0.0
          %589 = vmatpush1.xpose.msra.mxu0 0.0
          %590 = vmatprep.subr.mxu0 0.0
          %591 = vmatpush1.xpose.msra.mxu0 0.0
          %592 = vmatprep.subr.mxu0 0.0
          %593 = vmatpush1.xpose.msra.mxu0 0.0
          %594 = vmatprep.subr.mxu0 0.0
          %595 = vmatpush1.xpose.msra.mxu0 0.0
          %596 = vmatprep.subr.mxu0 0.0
          %597 = vmatpush1.xpose.msra.mxu0 0.0
          %598 = vmatprep.mubr.f32.mxu0 1.0
          %599 = vmatmul.mubr.f32.gmra.mrb[0].mxu0 1.0
          %v600 = vpop.f32.mrb[0].mxu0
          %v601 = vadd.f32 0.0, %v600
          %v602 = vpop.f32.mrb[0].mxu0
          %603 = vdwg.mxu0
          %s604 = scalar_lea.vmem [#allocation2], %s388
          %vm605 = vcmask 253952
          %606 = vst.msk [vmem:[%s604] sm:$0x1] %vm605, %v601
        $region65: #{tpu_custom_call.1} parent=51 // loop_footer
          %s392 = sadd.s32 1, %s388
        $region66: #{tpu_custom_call.1} parent=51 // loop_footer_branch
          %387 = sbr.rel target = $region62
        $region67: #{tpu_custom_call.1} parent=51 // loop_exit
          _
        %v607 = vld [vmem:[#allocation2] sm:$0xff]
        %v608 = vld [vmem:[%s3] sm:$0xff]
        %v609 = vld [vmem:[%s3 + $0x8] sm:$0xff]
        %v610 = vld [vmem:[%s3 + $0x10] sm:$0xff]
        %v611 = vld [vmem:[%s3 + $0x18] sm:$0xff]
        %vm612 = vcmask 261120
        %v614 = vsel %vm612, %v607, 0
        %616 = vmatprep.subr.mxu0 0.0
        %617 = vmatpush1.msra.mxu0 %v608
        %618 = vmatprep.subr.mxu0 0.0
        %619 = vmatpush1.msra.mxu0 %v609
        %620 = vmatprep.subr.mxu0 0.0
        %621 = vmatpush1.msra.mxu0 %v610
        %622 = vmatprep.subr.mxu0 0.0
        %623 = vmatpush1.msra.mxu0 %v611
        %624 = vmatprep.subr.mxu0 0.0
        %625 = vmatpush1.msra.mxu0 0.0
        %626 = vmatprep.subr.mxu0 0.0
        %627 = vmatpush1.msra.mxu0 0.0
        %628 = vmatprep.subr.mxu0 0.0
        %629 = vmatpush1.msra.mxu0 0.0
        %630 = vmatprep.subr.mxu0 0.0
        %631 = vmatpush1.msra.mxu0 0.0
        %632 = vmatprep.subr.mxu0 0.0
        %633 = vmatpush1.msra.mxu0 0.0
        %634 = vmatprep.subr.mxu0 0.0
        %635 = vmatpush1.msra.mxu0 0.0
        %636 = vmatprep.subr.mxu0 0.0
        %637 = vmatpush1.msra.mxu0 0.0
        %638 = vmatprep.subr.mxu0 0.0
        %639 = vmatpush1.msra.mxu0 0.0
        %640 = vmatprep.subr.mxu0 0.0
        %641 = vmatpush1.msra.mxu0 0.0
        %642 = vmatprep.subr.mxu0 0.0
        %643 = vmatpush1.msra.mxu0 0.0
        %644 = vmatprep.subr.mxu0 0.0
        %645 = vmatpush1.msra.mxu0 0.0
        %646 = vmatprep.subr.mxu0 0.0
        %647 = vmatpush1.msra.mxu0 0.0
        %648 = vmatprep.subr.mxu0 0.0
        %649 = vmatpush1.msra.mxu0 0.0
        %650 = vmatprep.subr.mxu0 0.0
        %651 = vmatpush1.msra.mxu0 0.0
        %652 = vmatprep.subr.mxu0 0.0
        %653 = vmatpush1.msra.mxu0 0.0
        %654 = vmatprep.subr.mxu0 0.0
        %655 = vmatpush1.msra.mxu0 0.0
        %656 = vmatprep.subr.mxu0 0.0
        %657 = vmatpush1.msra.mxu0 0.0
        %658 = vmatprep.subr.mxu0 0.0
        %659 = vmatpush1.msra.mxu0 0.0
        %660 = vmatprep.subr.mxu0 0.0
        %661 = vmatpush1.msra.mxu0 0.0
        %662 = vmatprep.subr.mxu0 0.0
        %663 = vmatpush1.msra.mxu0 0.0
        %664 = vmatprep.subr.mxu0 0.0
        %665 = vmatpush1.msra.mxu0 0.0
        %666 = vmatprep.subr.mxu0 0.0
        %667 = vmatpush1.msra.mxu0 0.0
        %668 = vmatprep.subr.mxu0 0.0
        %669 = vmatpush1.msra.mxu0 0.0
        %670 = vmatprep.subr.mxu0 0.0
        %671 = vmatpush1.msra.mxu0 0.0
        %672 = vmatprep.subr.mxu0 0.0
        %673 = vmatpush1.msra.mxu0 0.0
        %674 = vmatprep.subr.mxu0 0.0
        %675 = vmatpush1.msra.mxu0 0.0
        %676 = vmatprep.subr.mxu0 0.0
        %677 = vmatpush1.msra.mxu0 0.0
        %678 = vmatprep.subr.mxu0 0.0
        %679 = vmatpush1.msra.mxu0 0.0
        %680 = vmatprep.mubr.f32.mxu0 0.0
        %681 = vmatmul.mubr.f32.gmra.mrb[0].mxu0 %v614
        %v682 = vpop.f32.mrb[0].mxu0
        %v683 = vadd.f32 0.0, %v682
        %v684 = vpop.f32.mrb[0].mxu0
        %685 = vdwg.mxu0
        %v686 = vld [vmem:[%s4] sm:$0x1]
        %v688 = vlaneseq
        %v689 = vshrl.u32 %v688, 7
        %v690 = vsub.s32 0, %v689
        %v691 = vrot.slane %v686, %v690
        %v693 = vsub.f32 %v683, %v691
        %v694 = vld [vmem:[%s5] sm:$0x1]
        %v696 = vlaneseq
        %v697 = vshrl.u32 %v696, 7
        %v698 = vsub.s32 0, %v697
        %v699 = vrot.slane %v694, %v698
        %v701 = vmul.f32 %v693, %v699
        %702 = vst [vmem:[%s377] sm:$0xff] %v701
        %v703 = vld [vmem:[#allocation6] sm:$0xff]
        %v704 = vld [vmem:[#allocation6 + $0x8] sm:$0xff]
        %v705 = vld [vmem:[#allocation6 + $0x10] sm:$0xff]
        %v706 = vld [vmem:[#allocation6 + $0x18] sm:$0xff]
        %v707 = vld [vmem:[#allocation6 + $0x20] sm:$0xff]
        %v708 = vld [vmem:[#allocation6 + $0x28] sm:$0xff]
        %v709 = vld [vmem:[#allocation6 + $0x30] sm:$0xff]
        %v710 = vld [vmem:[#allocation6 + $0x38] sm:$0xff]
        %v711 = vld [vmem:[#allocation6 + $0x40] sm:$0xff]
        %v712 = vld [vmem:[#allocation6 + $0x48] sm:$0xff]
        %v713 = vld [vmem:[#allocation6 + $0x50] sm:$0xff]
        %v714 = vld [vmem:[#allocation6 + $0x58] sm:$0xff]
        %v715 = vld [vmem:[#allocation6 + $0x60] sm:$0xff]
        %v716 = vld [vmem:[#allocation6 + $0x68] sm:$0xff]
        %v717 = vld [vmem:[#allocation6 + $0x70] sm:$0xff]
        %v718 = vld [vmem:[#allocation6 + $0x78] sm:$0xff]
        %v719 = vld [vmem:[%s7] sm:$0x1]
        %v721 = vlaneseq
        %v722 = vshrl.u32 %v721, 7
        %v723 = vsub.s32 0, %v722
        %v724 = vrot.slane %v719, %v723
        %726 = vmatprep.subr.mxu0 0.0
        %727 = vmatpush1.msra.mxu0 %v703
        %728 = vmatprep.subr.mxu0 0.0
        %729 = vmatpush1.msra.mxu0 %v704
        %730 = vmatprep.subr.mxu0 0.0
        %731 = vmatpush1.msra.mxu0 %v705
        %732 = vmatprep.subr.mxu0 0.0
        %733 = vmatpush1.msra.mxu0 %v706
        %734 = vmatprep.subr.mxu0 0.0
        %735 = vmatpush1.msra.mxu0 %v707
        %736 = vmatprep.subr.mxu0 0.0
        %737 = vmatpush1.msra.mxu0 %v708
        %738 = vmatprep.subr.mxu0 0.0
        %739 = vmatpush1.msra.mxu0 %v709
        %740 = vmatprep.subr.mxu0 0.0
        %741 = vmatpush1.msra.mxu0 %v710
        %742 = vmatprep.subr.mxu0 0.0
        %743 = vmatpush1.msra.mxu0 %v711
        %744 = vmatprep.subr.mxu0 0.0
        %745 = vmatpush1.msra.mxu0 %v712
        %746 = vmatprep.subr.mxu0 0.0
        %747 = vmatpush1.msra.mxu0 %v713
        %748 = vmatprep.subr.mxu0 0.0
        %749 = vmatpush1.msra.mxu0 %v714
        %750 = vmatprep.subr.mxu0 0.0
        %751 = vmatpush1.msra.mxu0 %v715
        %752 = vmatprep.subr.mxu0 0.0
        %753 = vmatpush1.msra.mxu0 %v716
        %754 = vmatprep.subr.mxu0 0.0
        %755 = vmatpush1.msra.mxu0 %v717
        %756 = vmatprep.subr.mxu0 0.0
        %757 = vmatpush1.msra.mxu0 %v718
        %758 = vmatprep.subr.mxu0 0.0
        %759 = vmatpush1.msra.mxu0 0.0
        %760 = vmatprep.subr.mxu0 0.0
        %761 = vmatpush1.msra.mxu0 0.0
        %762 = vmatprep.subr.mxu0 0.0
        %763 = vmatpush1.msra.mxu0 0.0
        %764 = vmatprep.subr.mxu0 0.0
        %765 = vmatpush1.msra.mxu0 0.0
        %766 = vmatprep.subr.mxu0 0.0
        %767 = vmatpush1.msra.mxu0 0.0
        %768 = vmatprep.subr.mxu0 0.0
        %769 = vmatpush1.msra.mxu0 0.0
        %770 = vmatprep.subr.mxu0 0.0
        %771 = vmatpush1.msra.mxu0 0.0
        %772 = vmatprep.subr.mxu0 0.0
        %773 = vmatpush1.msra.mxu0 0.0
        %774 = vmatprep.subr.mxu0 0.0
        %775 = vmatpush1.msra.mxu0 0.0
        %776 = vmatprep.subr.mxu0 0.0
        %777 = vmatpush1.msra.mxu0 0.0
        %778 = vmatprep.subr.mxu0 0.0
        %779 = vmatpush1.msra.mxu0 0.0
        %780 = vmatprep.subr.mxu0 0.0
        %781 = vmatpush1.msra.mxu0 0.0
        %782 = vmatprep.subr.mxu0 0.0
        %783 = vmatpush1.msra.mxu0 0.0
        %784 = vmatprep.subr.mxu0 0.0
        %785 = vmatpush1.msra.mxu0 0.0
        %786 = vmatprep.subr.mxu0 0.0
        %787 = vmatpush1.msra.mxu0 0.0
        %788 = vmatprep.subr.mxu0 0.0
        %789 = vmatpush1.msra.mxu0 0.0
        %790 = vmatprep.mubr.f32.mxu0 0.0
        %791 = vmatmul.mubr.f32.gmra.mrb[0].mxu0 %v701
        %v792 = vpop.f32.mrb[0].mxu0
        %v793 = vadd.f32 %v724, %v792
        %v794 = vpop.f32.mrb[0].mxu0
        %795 = vdwg.mxu0
        %796 = vst [vmem:[%s370] sm:$0xff] %v793
        %s797 = sand.u32 %s212, 1
        %s798 = scalar_lea.sflag [#allocation5], %s797
        %s799 = sand.u32 %s212, 1
        %s800 = smul.addr %s799, 8
        %s801 = scalar_lea.vmem [#allocation8], %s800
        %s802 = sand.u32 %s238, 1
        %s803 = scalar_lea.sflag [#allocation10], %s802
        %s804 = sand.u32 %s238, 1
        %s805 = smul.addr %s804, 8
        %s806 = scalar_lea.vmem [#allocation9], %s805
        // Predicated region
        $region68: #{tpu_custom_call.1} parent=51 // pred_check
          %p807 = pneg %p222
        $region69: #{tpu_custom_call.1} parent=51 // pred_check_branch
          %809 = sbr.rel (%p807) target = $region71
        $region70: #{tpu_custom_call.1} parent=51 // pred_region
          %s811 = ssub.s32 128, 128
          %812 = vsyncadd %s798, %s811
          %s813 = smul.addr %s31, 128
          %s814 = scalar_lea.hbm %s8, %s813
          %s816 = sshll.u32 %s801, 4
          %s817 = int_to_ptr.vmem [resolvable:$true] %s816
          %819 = dma.vmem_to_hbm [thread:$0]  %s817, 128, %s814, %s798
        $region71: #{tpu_custom_call.1} parent=51 // pred_fallthru
          _
        // Predicated region
        $region72: #{tpu_custom_call.1} parent=51 // pred_check
          %p820 = pneg %p248
        $region73: #{tpu_custom_call.1} parent=51 // pred_check_branch
          %822 = sbr.rel (%p820) target = $region75
        $region74: #{tpu_custom_call.1} parent=51 // pred_region
          %s824 = ssub.s32 128, 128
          %825 = vsyncadd %s803, %s824
          %s826 = smul.addr %s31, 128
          %s827 = scalar_lea.hbm %s9, %s826
          %s829 = sshll.u32 %s806, 4
          %s830 = int_to_ptr.vmem [resolvable:$true] %s829
          %832 = dma.vmem_to_hbm [thread:$0]  %s830, 128, %s827, %s803
        $region75: #{tpu_custom_call.1} parent=51 // pred_fallthru
          _
      $region52: #{tpu_custom_call.1} parent=5 // pred_fallthru
        _
      %p833 = scmp.le.s32.totalorder 2, %s26
      // Predicated region
      $region76: #{tpu_custom_call.1} parent=5 // pred_check
        %p834 = pneg %p833
      $region77: #{tpu_custom_call.1} parent=5 // pred_check_branch
        %836 = sbr.rel (%p834) target = $region79
      $region78: #{tpu_custom_call.1} parent=5 // pred_region
        %s837 = ssub.s32 %s26, 2
        // Predicated region
        $region80: #{tpu_custom_call.1} parent=78 // pred_check
          %p838 = pneg %p228
        $region81: #{tpu_custom_call.1} parent=78 // pred_check_branch
          %840 = sbr.rel (%p838) target = $region83
        $region82: #{tpu_custom_call.1} parent=78 // pred_region
          %s841 = sand.u32 %s213, 1
          %s842 = scalar_lea.sflag [#allocation5], %s841
          %s843 = sand.u32 %s213, 1
          %s844 = smul.addr %s843, 8
          %s845 = scalar_lea.vmem [#allocation8], %s844
          %846 = dma.done %s842, 128
        $region83: #{tpu_custom_call.1} parent=78 // pred_fallthru
          _
        // Predicated region
        $region84: #{tpu_custom_call.1} parent=78 // pred_check
          %p847 = pneg %p254
        $region85: #{tpu_custom_call.1} parent=78 // pred_check_branch
          %849 = sbr.rel (%p847) target = $region87
        $region86: #{tpu_custom_call.1} parent=78 // pred_region
          %s850 = sand.u32 %s239, 1
          %s851 = scalar_lea.sflag [#allocation10], %s850
          %s852 = sand.u32 %s239, 1
          %s853 = smul.addr %s852, 8
          %s854 = scalar_lea.vmem [#allocation9], %s853
          %855 = dma.done %s851, 128
        $region87: #{tpu_custom_call.1} parent=78 // pred_fallthru
          _
      $region79: #{tpu_custom_call.1} parent=5 // pred_fallthru
        _
    $region6: #{tpu_custom_call.1} parent=1 // loop_footer
      %s30 = sadd.s32 1, %s26
    $region7: #{tpu_custom_call.1} parent=1 // loop_footer_branch
      %25 = sbr.rel target = $region3
    $region8: #{tpu_custom_call.1} parent=1 // loop_exit
      _
    %856 = vsyncpa [#allocation4], 1
    %s857 = scalar_lea.sflag [#allocation4], 1
    %858 = vsyncpa %s857, 1
    %859 = vsyncpa [#allocation7], 1
    %860 = vsyncpa [#allocation5], 1
    %s861 = scalar_lea.sflag [#allocation5], 1
    %862 = vsyncpa %s861, 1
    %863 = vsyncpa [#allocation10], 1
    %s864 = scalar_lea.sflag [#allocation10], 1
    %865 = vsyncpa %s864, 1

</llo_original>
